<compile_context>
chip_gen: v7x
topology: tpu7x:2x2x1
jax: 0.10.0
libtpu: 0.0.40
codegen_flags: <defaults>
</compile_context>

<pallas_src>
import functools

import jax
import jax.numpy as jnp
from jax.experimental import pallas as pl
from jax.experimental.pallas import tpu as pltpu

EPS = 1e-5          # torch.nn.LayerNorm default
BF16 = jnp.bfloat16
F32 = jnp.float32


def _round_up(n, m):
    return ((n + m - 1) // m) * m


def _ln(x, g, b):
    """LayerNorm over the last axis with fp32 statistics (fp16-safe LayerNorm)."""
    xf = x.astype(F32)
    mu = jnp.mean(xf, axis=-1, keepdims=True)
    var = jnp.mean(jnp.square(xf - mu), axis=-1, keepdims=True)
    return (xf - mu) * jax.lax.rsqrt(var + EPS) * g + b


# --------------------------- generation-aware VMEM budget ---------------------------
@functools.lru_cache(maxsize=None)
def _vmem_limit():
    cap = 128 * 1024 * 1024
    try:
        cap = int(pltpu.get_tpu_info().vmem_capacity_bytes)
    except Exception:
        pass
    # ~5/8 of physical capacity (80 MiB on 128 MiB parts, 40 MiB on v7x's 64 MiB),
    # clamped to a sane range; weights are single-buffered below, so this is enough.
    return int(max(32 * 1024 * 1024, min(cap * 5 // 8, 96 * 1024 * 1024)))


# ---------------------- single-buffered constant-weight BlockSpecs ------------------
_BUFFERED_ONE = None


def _supports_buffered_one():
    """Probe whether pipeline_mode=pl.Buffered(1) constructs, lowers and runs."""
    try:
        spec = pl.BlockSpec((8, 128), lambda i: (0, 0), pipeline_mode=pl.Buffered(1))
    except Exception:
        return False

    def _k(a_ref, c_ref, o_ref):
        o_ref[...] = a_ref[...] + c_ref[...]

    try:
        z = jnp.zeros((8, 128), jnp.float32)
        out = pl.pallas_call(
            _k,
            grid=(1,),
            out_shape=jax.ShapeDtypeStruct((8, 128), jnp.float32),
            in_specs=[pl.BlockSpec((8, 128), lambda i: (0, 0)), spec],
            out_specs=pl.BlockSpec((8, 128), lambda i: (0, 0)),
        )(z, z)
        jax.block_until_ready(out)
        return True
    except Exception:
        return False


def _const_spec(shape):
    """BlockSpec for a grid-invariant (weight) input: constant index map,
    single-buffered when supported (no point double-buffering data that never changes)."""
    global _BUFFERED_ONE
    if _BUFFERED_ONE is None:
        _BUFFERED_ONE = _supports_buffered_one()
    idx = lambda *_: (0,) * len(shape)
    if _BUFFERED_ONE:
        return pl.BlockSpec(shape, idx, pipeline_mode=pl.Buffered(1))
    return pl.BlockSpec(shape, idx)


# ------------------------------- call helpers ---------------------------------------
def _pick_bt(B, S, D):
    """Batch-tile size: amortize weight DMA over several images per grid step while
    keeping the in-kernel f32 qkv slab (Bt*S x 3D) around <= 16 MiB."""
    cap = max(1, (16 * 1024 * 1024) // max(1, S * 3 * D * 4))
    cap = min(cap, 8)
    for bt in range(min(B, cap), 0, -1):
        if B % bt == 0:
            return bt
    return 1


def _batch_call(kernel, x, consts, out_feat, out_dtype):
    """Per-batch-tile pallas_call: x is (B, S, D); weights are grid-invariant."""
    B, S, D = x.shape
    bt = _pick_bt(B, S, D)
    in_specs = [pl.BlockSpec((bt, S, D), lambda i: (i, 0, 0))]
    in_specs += [_const_spec(c.shape) for c in consts]
    return pl.pallas_call(
        kernel,
        grid=(B // bt,),
        out_shape=jax.ShapeDtypeStruct((B, S, out_feat), out_dtype),
        in_specs=in_specs,
        out_specs=pl.BlockSpec((bt, S, out_feat), lambda i: (i, 0, 0)),
        compiler_params=pltpu.CompilerParams(
            dimension_semantics=("parallel",),
            vmem_limit_bytes=_vmem_limit()),
    )(x, *consts)


def _row_call(kernel, x2d, consts, out_feat, out_dtype, row_tile=512):
    """Row-tiled pallas_call on a flattened (rows, D) stream (row-wise ops only)."""
    R, D = x2d.shape
    tr = R if R <= row_tile else row_tile       # R is B*S_pad -> multiple of 8
    in_specs = [pl.BlockSpec((tr, D), lambda i: (i, 0))]
    in_specs += [_const_spec(c.shape) for c in consts]
    return pl.pallas_call(
        kernel,
        grid=(pl.cdiv(R, tr),),
        out_shape=jax.ShapeDtypeStruct((R, out_feat), out_dtype),
        in_specs=in_specs,
        out_specs=pl.BlockSpec((tr, out_feat), lambda i: (i, 0)),
        compiler_params=pltpu.CompilerParams(
            dimension_semantics=("parallel",),
            vmem_limit_bytes=_vmem_limit()),
    )(x2d, *consts)


# ----------------------- patch embedding (conv1 as GEMM) ----------------------------
def _patch_embed_kernel(p_ref, w_ref, o_ref):
    o_ref[...] = jnp.dot(p_ref[...], w_ref[...],
                         preferred_element_type=F32).astype(o_ref.dtype)


def patch_embed(patches, w):
    # patches: (M, K_pad) bf16, w: (K_pad, width) bf16 -> (M, width) bf16
    M, K = patches.shape
    N = w.shape[1]
    tm = M if M <= 512 else 512                 # 512-row tiles ~85% of HBM roofline
    return pl.pallas_call(
        _patch_embed_kernel,
        grid=(pl.cdiv(M, tm),),
        out_shape=jax.ShapeDtypeStruct((M, N), BF16),
        in_specs=[pl.BlockSpec((tm, K), lambda i: (i, 0)),
                  _const_spec(w.shape)],
        out_specs=pl.BlockSpec((tm, N), lambda i: (i, 0)),
        compiler_params=pltpu.CompilerParams(
            dimension_semantics=("parallel",),
            vmem_limit_bytes=_vmem_limit()),
    )(patches, w)


# --------------------------- pos-embed add + ln_pre ----------------------------------
def _embed_ln_kernel(x_ref, pos_ref, g_ref, b_ref, o_ref):
    x = x_ref[...].astype(F32) + pos_ref[...]          # (Bt,S,D) + (S,D) broadcast
    o_ref[...] = _ln(x, g_ref[...], b_ref[...]).astype(o_ref.dtype)


def embed_ln_pre(x, pos, g, b):
    return _batch_call(_embed_ln_kernel, x, [pos, g, b], x.shape[-1], BF16)


# --------------- ResidualAttentionBlock: attention half (fused) ----------------------
def _attn_block_kernel(x_ref, g_ref, b_ref, wqkv_ref, bqkv_ref, wo_ref, bo_ref,
                       o_ref, *, n_heads, seq_valid, q_tile):
    Bt, S, D = x_ref.shape
    hd = D // n_heads

    x = x_ref[...].reshape(Bt * S, D).astype(F32)       # residual stream rows
    y = _ln(x, g_ref[...], b_ref[...]).astype(BF16)
    # 1/sqrt(hd) is pre-folded into the q columns of w_qkv / b_qkv on the host.
    qkv = jnp.dot(y, wqkv_ref[...], preferred_element_type=F32) + bqkv_ref[...]

    if seq_valid < S:                                    # mask padded key columns
        col = jax.lax.broadcasted_iota(jnp.int32, (1, 1, S), 2)
        kv_mask = jnp.where(col >= seq_valid, F32(-1e30), F32(0.0))
    else:
        kv_mask = None

    n_qt = -(-S // q_tile)
    ctx_rows = []
    for bi in range(Bt):                                 # per-image attention core
        rows = qkv[bi * S:(bi + 1) * S]                  # (S, 3D) f32, 8-row aligned
        q = rows[:, 0:D].reshape(S, n_heads, hd).transpose(1, 0, 2).astype(BF16)
        k = rows[:, D:2 * D].reshape(S, n_heads, hd).transpose(1, 0, 2).astype(BF16)
        v = rows[:, 2 * D:].reshape(S, n_heads, hd).transpose(1, 0, 2).astype(BF16)
        for t in range(n_qt):                            # bounded (H, TQ, S) scores
            q_t = q if n_qt == 1 else q[:, t * q_tile:min((t + 1) * q_tile, S)]
            s = jnp.einsum('hqd,hkd->hqk', q_t, k, preferred_element_type=F32)
            if kv_mask is not None:
                s = s + kv_mask
            s = s - jnp.max(s, axis=-1, keepdims=True)
            p = jnp.exp(s)
            p = p * pl.reciprocal(jnp.sum(p, axis=-1, keepdims=True), approx=True)
            c = jnp.einsum('hqk,hkd->hqd', p.astype(BF16), v,
                           preferred_element_type=F32)   # (H, TQ, hd)
            ctx_rows.append(c.transpose(1, 0, 2).reshape(-1, D).astype(BF16))
    ctx = ctx_rows[0] if len(ctx_rows) == 1 else jnp.concatenate(ctx_rows, axis=0)

    attn = jnp.dot(ctx, wo_ref[...], preferred_element_type=F32) + bo_ref[...]
    o_ref[...] = (x + attn).reshape(Bt, S, D).astype(o_ref.dtype)


def attn_block(x, lp, n_heads, seq_valid):
    consts = [lp['ln1_g'], lp['ln1_b'], lp['w_qkv'], lp['b_qkv'], lp['w_o'], lp['b_o']]
    kern = functools.partial(_attn_block_kernel, n_heads=n_heads,
                             seq_valid=seq_valid, q_tile=256)
    return _batch_call(kern, x, consts, x.shape[-1], BF16)


# ------------------- ResidualAttentionBlock: MLP half (fused) ------------------------
def _mlp_block_kernel(x_ref, g_ref, b_ref, wfc_ref, bfc_ref, wpr_ref, bpr_ref, o_ref):
    x = x_ref[...].astype(F32)
    y = _ln(x, g_ref[...], b_ref[...]).astype(BF16)
    h = jnp.dot(y, wfc_ref[...], preferred_element_type=F32) + bfc_ref[...]
    h = h * jax.nn.sigmoid(1.702 * h)                    # QuickGELU, f32 (v5e-safe)
    mlp = jnp.dot(h.astype(BF16), wpr_ref[...], preferred_element_type=F32) + bpr_ref[...]
    o_ref[...] = (x + mlp).astype(o_ref.dtype)


def mlp_block(x, lp):
    B, S, D = x.shape
    consts = [lp['ln2_g'], lp['ln2_b'], lp['w_fc'], lp['b_fc'], lp['w_pr'], lp['b_pr']]
    y = _row_call(_mlp_block_kernel, x.reshape(B * S, D), consts, D, BF16)
    return y.reshape(B, S, D)


# -------------------------- ln_post + output projection ------------------------------
def _post_kernel(x_ref, g_ref, b_ref, proj_ref, o_ref):
    # LN + proj on ALL rows (row-wise op); cls/pad rows dropped by the caller.
    y = _ln(x_ref[...], g_ref[...], b_ref[...]).astype(BF16)
    o_ref[...] = jnp.dot(y, proj_ref[...], preferred_element_type=F32).astype(o_ref.dtype)


def post_proj(x2d, g, b, proj):
    return _row_call(_post_kernel, x2d, [g, b, proj], proj.shape[1], F32)


# -------------------------------- full forward ---------------------------------------
def vit_clip_forward(img, params, *, patch_size, heads):
    B, C, H, W = img.shape
    gh, gw = H // patch_size, W // patch_size
    width = params['conv1_w'].shape[0]
    HW = gh * gw
    S = HW + 1
    S_pad = _round_up(S, 8)

    # conv1 (stride == kernel, no bias) as patch extraction + tiled GEMM
    K = C * patch_size * patch_size
    K_pad = _round_up(K, 128)
    p = img.reshape(B, C, gh, patch_size, gw, patch_size)
    p = p.transpose(0, 2, 4, 1, 3, 5).reshape(B * HW, K)
    w = params['conv1_w'].reshape(width, K).T            # (K, width)
    if K_pad != K:
        p = jnp.pad(p, ((0, 0), (0, K_pad - K)))
        w = jnp.pad(w, ((0, K_pad - K), (0, 0)))
    tok = patch_embed(p.astype(BF16), w.astype(BF16)).reshape(B, HW, width)  # bf16

    # cls-token concat + sequence padding on the host (single cheap XLA ops),
    # keeping token rows 8-sublane aligned inside every kernel.
    cls = jnp.broadcast_to(params['class_embedding'][None].astype(BF16), (B, 1, width))
    x0 = jnp.concatenate([cls, tok], axis=1)             # (B, S, D) bf16
    # TODO(synk): get_abs_pos linear-interpolation resize (token count != pe length)
    # is not implemented; this is the reshape-only path of the reference module.
    pos = params['positional_embedding']
    if S_pad != S:
        x0 = jnp.pad(x0, ((0, 0), (0, S_pad - S), (0, 0)))
        pos = jnp.pad(pos, ((0, S_pad - S), (0, 0)))

    x = embed_ln_pre(x0, pos, params['ln_pre_g'], params['ln_pre_b'])   # bf16 stream

    # transformer: per-layer attention/MLP fused kernels. Batch-first here is
    # equivalent to the PyTorch (S, B, D) permute since attention never mixes
    # batch elements; padded key columns are masked in the softmax. Padded query
    # rows carry garbage but are sliced off after post_proj.
    for lp in params['layers']:
        x = attn_block(x, lp, heads, S)
        x = mlp_block(x, lp)

    out_dim = params['proj'].shape[1]
    y2 = post_proj(x.reshape(B * S_pad, width),
                   params['ln_post_g'], params['ln_post_b'], params['proj'])
    y = y2.reshape(B, S_pad, out_dim)[:, 1:1 + HW, :]    # drop cls + pad rows
    return y.reshape(B, gh, gw, out_dim).transpose(0, 3, 1, 2)   # NCHW


# ------------------------------ deterministic init -----------------------------------
def init_params(key, *, patch_size, width, layers, heads, output_dim, pe_tokens):
    keys = jax.random.split(key, 8 + layers)
    scale = width ** (-0.5)
    hd = width // heads
    # host-side prep: fold the attention 1/sqrt(hd) into the q columns of w_qkv/b_qkv
    col_scale = jnp.concatenate([jnp.full((width,), 1.0 / (hd ** 0.5), F32),
                                 jnp.ones((2 * width,), F32)])[None, :]
    params = {
        'conv1_w': 0.02 * jax.random.normal(keys[0], (width, 3, patch_size, patch_size), F32),
        'class_embedding': scale * jax.random.normal(keys[1], (1, width), F32),
        'positional_embedding': scale * jax.random.normal(keys[2], (pe_tokens, width), F32),
        'ln_pre_g': 1.0 + 0.02 * jax.random.normal(keys[3], (1, width), F32),
        'ln_pre_b': 0.02 * jax.random.normal(keys[4], (1, width), F32),
        'ln_post_g': 1.0 + 0.02 * jax.random.normal(keys[5], (1, width), F32),
        'ln_post_b': 0.02 * jax.random.normal(keys[6], (1, width), F32),
        'proj': (scale * jax.random.normal(keys[7], (width, output_dim), F32)).astype(BF16),
        'layers': [],
    }
    for li in range(layers):
        k = jax.random.split(keys[8 + li], 8)
        w_qkv = 0.02 * jax.random.normal(k[0], (width, 3 * width), F32)
        b_qkv = 0.02 * jax.random.normal(k[1], (1, 3 * width), F32)
        params['layers'].append({
            'ln1_g': jnp.ones((1, width), F32),
            'ln1_b': jnp.zeros((1, width), F32),
            # weights stored pre-transposed (in_dim, out_dim) and in bf16 for the MXU;
            # q slice pre-scaled by 1/sqrt(hd)
            'w_qkv': (w_qkv * col_scale).astype(BF16),
            'b_qkv': b_qkv * col_scale,
            'w_o': (0.02 * jax.random.normal(k[2], (width, width), F32)).astype(BF16),
            'b_o': 0.02 * jax.random.normal(k[3], (1, width), F32),
            'ln2_g': jnp.ones((1, width), F32),
            'ln2_b': jnp.zeros((1, width), F32),
            'w_fc': (0.02 * jax.random.normal(k[4], (width, 4 * width), F32)).astype(BF16),
            'b_fc': 0.02 * jax.random.normal(k[5], (1, 4 * width), F32),
            'w_pr': (0.02 * jax.random.normal(k[6], (4 * width, width), F32)).astype(BF16),
            'b_pr': 0.02 * jax.random.normal(k[7], (1, width), F32),
        })
    return params


if __name__ == "__main__":
    # Small ViT_CLIP config: pe_size=17 -> grid_size=4, input_resolution=16
    PATCH = 4
    WIDTH = 32
    LAYERS = 2
    HEADS = 4
    OUT_DIM = 16
    PE_TOKENS = (16 // PATCH) ** 2 + 1      # 17

    key = jax.random.PRNGKey(0)
    k_x, k_p = jax.random.split(key)
    x = jax.random.normal(k_x, (2, 3, 16, 16), jnp.float32)     # NCHW, like PyTorch
    params = init_params(k_p, patch_size=PATCH, width=WIDTH, layers=LAYERS,
                         heads=HEADS, output_dim=OUT_DIM, pe_tokens=PE_TOKENS)

    out = vit_clip_forward(x, params, patch_size=PATCH, heads=HEADS)
    out = jax.block_until_ready(out)
    assert out.shape == (2, OUT_DIM, 4, 4), out.shape
    assert bool(jnp.all(jnp.isfinite(out)))
    print("KERNEL_OK")
</pallas_src>

<mosaic_0001>
module attributes {stable_mosaic.version = 11 : i64} {
  func.func @_k(%arg0: i32, %arg1: memref<8x128xf32, #tpu.memory_space<vmem>>, %arg2: memref<8x128xf32, #tpu.memory_space<vmem>>, %arg3: memref<8x128xf32, #tpu.memory_space<vmem>>) attributes {dimension_semantics = [#tpu.dimension_semantics<arbitrary>], iteration_bounds = array<i64: 1>, scalar_prefetch = 0 : i64, scratch_operands = 0 : i64, tpu.core_type = #tpu.core_type<tc>, window_params = [{pipeline_mode = #tpu.pipeline_mode<synchronous>, transform_indices = @transform_0, window_bounds = array<i64: 8, 128>}, {pipeline_mode = #tpu.pipeline_mode<synchronous>, transform_indices = @transform_1, window_bounds = array<i64: 8, 128>}, {pipeline_mode = #tpu.pipeline_mode<synchronous>, transform_indices = @transform_2, window_bounds = array<i64: 8, 128>}]} {
    %c0 = arith.constant 0 : index
    %c0_0 = arith.constant 0 : index
    %0 = vector.load %arg1[%c0, %c0_0] : memref<8x128xf32, #tpu.memory_space<vmem>>, vector<8x128xf32>
    %c0_1 = arith.constant 0 : index
    %c0_2 = arith.constant 0 : index
    %1 = vector.load %arg2[%c0_1, %c0_2] : memref<8x128xf32, #tpu.memory_space<vmem>>, vector<8x128xf32>
    %2 = arith.addf %0, %1 : vector<8x128xf32>
    %c0_3 = arith.constant 0 : index
    %c0_4 = arith.constant 0 : index
    %3 = vector.load %arg3[%c0_3, %c0_4] : memref<8x128xf32, #tpu.memory_space<vmem>>, vector<8x128xf32>
    tpu.vector_store %arg3[%c0_3, %c0_4], %2 {strides = array<i32>} : memref<8x128xf32, #tpu.memory_space<vmem>>, vector<8x128xf32>,
    return
  }
  func.func @transform_0(%arg0: i32) -> (i32, i32) {
    %c0_i32 = arith.constant 0 : i32
    %c0_i32_0 = arith.constant 0 : i32
    %c0_i32_1 = arith.constant 0 : i32
    return %c0_i32, %c0_i32_0 : i32, i32
  }
  func.func @transform_1(%arg0: i32) -> (i32, i32) {
    %c0_i32 = arith.constant 0 : i32
    %c0_i32_0 = arith.constant 0 : i32
    %c0_i32_1 = arith.constant 0 : i32
    return %c0_i32, %c0_i32_0 : i32, i32
  }
  func.func @transform_2(%arg0: i32) -> (i32, i32) {
    %c0_i32 = arith.constant 0 : i32
    %c0_i32_0 = arith.constant 0 : i32
    %c0_i32_1 = arith.constant 0 : i32
    return %c0_i32, %c0_i32_0 : i32, i32
  }
}

module attributes {stable_mosaic.version = 11 : i64} {
  func.func @_patch_embed_kernel(%arg0: i32, %arg1: memref<32x128xbf16, #tpu.memory_space<vmem>>, %arg2: memref<128x32xbf16, #tpu.memory_space<vmem>>, %arg3: memref<32x32xbf16, #tpu.memory_space<vmem>>) attributes {dimension_semantics = [#tpu.dimension_semantics<parallel>], iteration_bounds = array<i64: 1>, scalar_prefetch = 0 : i64, scratch_operands = 0 : i64, tpu.core_type = #tpu.core_type<tc>, window_params = [{transform_indices = @transform_0, window_bounds = array<i64: 32, 128>}, {pipeline_mode = #tpu.pipeline_mode<synchronous>, transform_indices = @transform_1, window_bounds = array<i64: 128, 32>}, {transform_indices = @transform_2, window_bounds = array<i64: 32, 32>}]} {
    %c0 = arith.constant 0 : index
    %c0_0 = arith.constant 0 : index
    %0 = vector.load %arg1[%c0, %c0_0] : memref<32x128xbf16, #tpu.memory_space<vmem>>, vector<32x128xbf16>
    %c0_1 = arith.constant 0 : index
    %c0_2 = arith.constant 0 : index
    %1 = vector.load %arg2[%c0_1, %c0_2] : memref<128x32xbf16, #tpu.memory_space<vmem>>, vector<128x32xbf16>
    %cst = arith.constant dense<0.000000e+00> : vector<32x32xf32>
    %2 = tpu.matmul %0, %1, %cst {dimension_numbers = #tpu.dot_dimension_numbers<[1], [0], [0], [1], [0, 0, 1, 1], [], []>} : vector<32x128xbf16>, vector<128x32xbf16>, vector<32x32xf32> -> vector<32x32xf32>
    %3 = arith.truncf %2 : vector<32x32xf32> to vector<32x32xbf16>
    %c0_3 = arith.constant 0 : index
    %c0_4 = arith.constant 0 : index
    %4 = vector.load %arg3[%c0_3, %c0_4] : memref<32x32xbf16, #tpu.memory_space<vmem>>, vector<32x32xbf16>
    tpu.vector_store %arg3[%c0_3, %c0_4], %3 {strides = array<i32>} : memref<32x32xbf16, #tpu.memory_space<vmem>>, vector<32x32xbf16>,
    return
  }
  func.func @transform_0(%arg0: i32) -> (i32, i32) {
    %c0_i32 = arith.constant 0 : i32
    %c0_i32_0 = arith.constant 0 : i32
    return %arg0, %c0_i32 : i32, i32
  }
  func.func @transform_1(%arg0: i32) -> (i32, i32) {
    %c0_i32 = arith.constant 0 : i32
    %c0_i32_0 = arith.constant 0 : i32
    %c0_i32_1 = arith.constant 0 : i32
    return %c0_i32, %c0_i32_0 : i32, i32
  }
  func.func @transform_2(%arg0: i32) -> (i32, i32) {
    %c0_i32 = arith.constant 0 : i32
    %c0_i32_0 = arith.constant 0 : i32
    return %arg0, %c0_i32 : i32, i32
  }
}

</mosaic_0001>

<llo_original>
// kernel: tpu_custom_call.1
$region0: #{tpu_custom_call.1}
  #allocation0 [shape = 'u32[]', space=smem, size = 0x4, offset = 0x4, fixed_abs, tag = 'smem constant byte address 0x4 - core index']
  #allocation1 [shape = 'u32[144,128]{1,0:T(1,128)}', space=vmem, size = 0x12000, scoped, tag = 'internal scratch']
  %s0 = inlined_call_operand.hbm [shape: f32[8,128], index: 0, kind: input, shape index: {}]
  %s1 = inlined_call_operand.hbm [shape: f32[8,128], index: 1, kind: input, shape index: {}]
  %s2 = inlined_call_operand.hbm [shape: f32[8,128], index: 2, kind: output, shape index: {}]
  %s3 = sld [smem:[#allocation0]]
  $region26: #{tpu_custom_call.1} parent=0
    _
  %s5 = ssub.s32 1, %s3
  %s6 = scalar_select 0, %s5, %s3
  $region1: #{tpu_custom_call.1} parent=0
    #allocation2 [shape = 'u8[4096]{0}', space=vmem, size = 0x1000, scoped, tag = 'input window, operand 0, single buffered']
    #allocation3 [shape = 's32[1]{0}', space=sflag, size = 0x4, scoped, tag = 'scoped memory for tpu_custom_call.1']
    #allocation4 [shape = 's32[1]{0}', space=sflag, size = 0x4, scoped, tag = 'scoped memory for tpu_custom_call.1']
    #allocation5 [shape = 'u8[4096]{0}', space=vmem, size = 0x1000, scoped, tag = 'input window, operand 1, single buffered']
    #allocation6 [shape = 's32[1]{0}', space=sflag, size = 0x4, scoped, tag = 'scoped memory for tpu_custom_call.1']
    #allocation7 [shape = 'u8[4096]{0}', space=vmem, size = 0x1000, scoped, tag = 'output window, operand 0, single buffered']
    %7 = vsyncpa [#allocation3], 0
    %8 = vsyncpa [#allocation6], 0
    %9 = vsyncpa [#allocation4], 0
    // Predicated region
    $region2: #{tpu_custom_call.1} parent=1 // pred_check
      _
    $region3: #{tpu_custom_call.1} parent=1 // pred_check_branch
      %11 = sbr.rel (0) target = $region5
    $region4: #{tpu_custom_call.1} parent=1 // pred_region
      %s13 = ssub.s32 128, 128
      %14 = vsyncadd [#allocation3], %s13
      %s16 = sshll.u32 [#allocation2], 4
      %s17 = int_to_ptr.vmem [resolvable:$true] %s16
      %19 = dma.hbm_to_vmem [thread:$0]  %s0, 128, %s17, [#allocation3]
    $region5: #{tpu_custom_call.1} parent=1 // pred_fallthru
      _
    // Predicated region
    $region6: #{tpu_custom_call.1} parent=1 // pred_check
      _
    $region7: #{tpu_custom_call.1} parent=1 // pred_check_branch
      %21 = sbr.rel (0) target = $region9
    $region8: #{tpu_custom_call.1} parent=1 // pred_region
      %s23 = ssub.s32 128, 128
      %24 = vsyncadd [#allocation6], %s23
      %s26 = sshll.u32 [#allocation5], 4
      %s27 = int_to_ptr.vmem [resolvable:$true] %s26
      %29 = dma.hbm_to_vmem [thread:$0]  %s1, 128, %s27, [#allocation6]
    $region9: #{tpu_custom_call.1} parent=1 // pred_fallthru
      _
    // Predicated region
    $region10: #{tpu_custom_call.1} parent=1 // pred_check
      _
    $region11: #{tpu_custom_call.1} parent=1 // pred_check_branch
      %31 = sbr.rel (0) target = $region13
    $region12: #{tpu_custom_call.1} parent=1 // pred_region
      %32 = dma.done [#allocation3], 128
    $region13: #{tpu_custom_call.1} parent=1 // pred_fallthru
      _
    // Predicated region
    $region14: #{tpu_custom_call.1} parent=1 // pred_check
      _
    $region15: #{tpu_custom_call.1} parent=1 // pred_check_branch
      %34 = sbr.rel (0) target = $region17
    $region16: #{tpu_custom_call.1} parent=1 // pred_region
      %35 = dma.done [#allocation6], 128
    $region17: #{tpu_custom_call.1} parent=1 // pred_fallthru
      _
    %v36 = vld [vmem:[#allocation2] sm:$0xff]
    %v37 = vld [vmem:[#allocation5] sm:$0xff]
    %v38 = vadd.f32 %v36, %v37
    %39 = vst [vmem:[#allocation7] sm:$0xff] %v38
    // Predicated region
    $region18: #{tpu_custom_call.1} parent=1 // pred_check
      _
    $region19: #{tpu_custom_call.1} parent=1 // pred_check_branch
      %41 = sbr.rel (0) target = $region21
    $region20: #{tpu_custom_call.1} parent=1 // pred_region
      %s43 = ssub.s32 128, 128
      %44 = vsyncadd [#allocation4], %s43
      %s46 = sshll.u32 [#allocation7], 4
      %s47 = int_to_ptr.vmem [resolvable:$true] %s46
      %49 = dma.vmem_to_hbm [thread:$0]  %s47, 128, %s2, [#allocation4]
    $region21: #{tpu_custom_call.1} parent=1 // pred_fallthru
      _
    // Predicated region
    $region22: #{tpu_custom_call.1} parent=1 // pred_check
      _
    $region23: #{tpu_custom_call.1} parent=1 // pred_check_branch
      %51 = sbr.rel (0) target = $region25
    $region24: #{tpu_custom_call.1} parent=1 // pred_region
      %52 = dma.done [#allocation4], 128
    $region25: #{tpu_custom_call.1} parent=1 // pred_fallthru
      _
    %53 = vsyncpa [#allocation3], 1
    %54 = vsyncpa [#allocation6], 1
    %55 = vsyncpa [#allocation4], 1

// kernel: tpu_custom_call.1
$region0: #{tpu_custom_call.1}
  #allocation0 [shape = 'u32[]', space=smem, size = 0x4, offset = 0x4, fixed_abs, tag = 'smem constant byte address 0x4 - core index']
  #allocation1 [shape = 'u32[144,128]{1,0:T(1,128)}', space=vmem, size = 0x12000, scoped, tag = 'internal scratch']
  %s0 = inlined_call_operand.hbm [shape: bf16[32,128], index: 0, kind: input, shape index: {}]
  %s1 = inlined_call_operand.hbm [shape: bf16[128,32], index: 1, kind: input, shape index: {}]
  %s2 = inlined_call_operand.hbm [shape: bf16[32,32], index: 2, kind: output, shape index: {}]
  %s3 = sld [smem:[#allocation0]]
  $region26: #{tpu_custom_call.1} parent=0
    _
  %s5 = ssub.s32 1, %s3
  %s6 = scalar_select 0, %s5, %s3
  $region1: #{tpu_custom_call.1} parent=0
    #allocation2 [shape = 'u8[8192]{0}', space=vmem, size = 0x2000, scoped, tag = 'input window, operand 0, single buffered']
    #allocation3 [shape = 's32[1]{0}', space=sflag, size = 0x4, scoped, tag = 'scoped memory for tpu_custom_call.1']
    #allocation4 [shape = 's32[1]{0}', space=sflag, size = 0x4, scoped, tag = 'scoped memory for tpu_custom_call.1']
    #allocation5 [shape = 'u8[32768]{0}', space=vmem, size = 0x8000, scoped, tag = 'input window, operand 1, single buffered']
    #allocation6 [shape = 's32[1]{0}', space=sflag, size = 0x4, scoped, tag = 'scoped memory for tpu_custom_call.1']
    #allocation7 [shape = 'u8[8192]{0}', space=vmem, size = 0x2000, scoped, tag = 'output window, operand 0, single buffered']
    %7 = vsyncpa [#allocation3], 0
    %8 = vsyncpa [#allocation6], 0
    %9 = vsyncpa [#allocation4], 0
    // Predicated region
    $region2: #{tpu_custom_call.1} parent=1 // pred_check
      _
    $region3: #{tpu_custom_call.1} parent=1 // pred_check_branch
      %11 = sbr.rel (0) target = $region5
    $region4: #{tpu_custom_call.1} parent=1 // pred_region
      %s13 = ssub.s32 256, 256
      %14 = vsyncadd [#allocation3], %s13
      %s15 = sshll.u32 [#allocation2], 4
      %s16 = int_to_ptr.vmem [resolvable:$true] %s15
      %21 = dma.hbm_to_vmem [thread:$0]  %s0, 256, %s16, [#allocation3], 64, 64, 4
    $region5: #{tpu_custom_call.1} parent=1 // pred_fallthru
      _
    // Predicated region
    $region6: #{tpu_custom_call.1} parent=1 // pred_check
      _
    $region7: #{tpu_custom_call.1} parent=1 // pred_check_branch
      %23 = sbr.rel (0) target = $region9
    $region8: #{tpu_custom_call.1} parent=1 // pred_region
      %s25 = ssub.s32 1024, 1024
      %26 = vsyncadd [#allocation6], %s25
      %s27 = sshll.u32 [#allocation5], 4
      %s28 = int_to_ptr.vmem [resolvable:$true] %s27
      %33 = dma.hbm_to_vmem [thread:$0]  %s1, 1024, %s28, [#allocation6], 64, 64, 4
    $region9: #{tpu_custom_call.1} parent=1 // pred_fallthru
      _
    // Predicated region
    $region10: #{tpu_custom_call.1} parent=1 // pred_check
      _
    $region11: #{tpu_custom_call.1} parent=1 // pred_check_branch
      %35 = sbr.rel (0) target = $region13
    $region12: #{tpu_custom_call.1} parent=1 // pred_region
      %36 = dma.done [#allocation3], 256
    $region13: #{tpu_custom_call.1} parent=1 // pred_fallthru
      _
    // Predicated region
    $region14: #{tpu_custom_call.1} parent=1 // pred_check
      _
    $region15: #{tpu_custom_call.1} parent=1 // pred_check_branch
      %38 = sbr.rel (0) target = $region17
    $region16: #{tpu_custom_call.1} parent=1 // pred_region
      %39 = dma.done [#allocation6], 1024
    $region17: #{tpu_custom_call.1} parent=1 // pred_fallthru
      _
    %v41 = vld [vmem:[#allocation2] sm:$0xf]
    %v42 = vld [vmem:[#allocation2 + $0x4] sm:$0xf]
    %v43 = vld [vmem:[#allocation2 + $0x8] sm:$0xf]
    %v44 = vld [vmem:[#allocation2 + $0xc] sm:$0xf]
    %v45 = vld [vmem:[#allocation5] sm:$0xf]
    %v46 = vld [vmem:[#allocation5 + $0x4] sm:$0xf]
    %v47 = vld [vmem:[#allocation5 + $0x8] sm:$0xf]
    %v48 = vld [vmem:[#allocation5 + $0xc] sm:$0xf]
    %v49 = vld [vmem:[#allocation5 + $0x10] sm:$0xf]
    %v50 = vld [vmem:[#allocation5 + $0x14] sm:$0xf]
    %v51 = vld [vmem:[#allocation5 + $0x18] sm:$0xf]
    %v52 = vld [vmem:[#allocation5 + $0x1c] sm:$0xf]
    %v53 = vld [vmem:[#allocation5 + $0x20] sm:$0xf]
    %v54 = vld [vmem:[#allocation5 + $0x24] sm:$0xf]
    %v55 = vld [vmem:[#allocation5 + $0x28] sm:$0xf]
    %v56 = vld [vmem:[#allocation5 + $0x2c] sm:$0xf]
    %v57 = vld [vmem:[#allocation5 + $0x30] sm:$0xf]
    %v58 = vld [vmem:[#allocation5 + $0x34] sm:$0xf]
    %v59 = vld [vmem:[#allocation5 + $0x38] sm:$0xf]
    %v60 = vld [vmem:[#allocation5 + $0x3c] sm:$0xf]
    %v65 = vunpack.c.l.b16 %v41
    %v66 = vunpack.c.l.b16 %v42
    %v67 = vunpack.c.l.b16 %v43
    %v68 = vunpack.c.l.b16 %v44
    %v69 = vpack.c.b16 %v66, %v65
    %v70 = vpack.c.b16 %v68, %v67
    %v89 = vunpack.c.l.b16 %v45
    %v90 = vunpack.c.l.b16 %v46
    %v91 = vunpack.c.l.b16 %v47
    %v92 = vunpack.c.l.b16 %v48
    %v93 = vunpack.c.l.b16 %v49
    %v94 = vunpack.c.l.b16 %v50
    %v95 = vunpack.c.l.b16 %v51
    %v96 = vunpack.c.l.b16 %v52
    %v97 = vunpack.c.l.b16 %v53
    %v98 = vunpack.c.l.b16 %v54
    %v99 = vunpack.c.l.b16 %v55
    %v100 = vunpack.c.l.b16 %v56
    %v101 = vunpack.c.l.b16 %v57
    %v102 = vunpack.c.l.b16 %v58
    %v103 = vunpack.c.l.b16 %v59
    %v104 = vunpack.c.l.b16 %v60
    %v105 = vpack.c.b16 %v90, %v89
    %v106 = vpack.c.b16 %v92, %v91
    %v107 = vpack.c.b16 %v94, %v93
    %v108 = vpack.c.b16 %v96, %v95
    %v109 = vpack.c.b16 %v98, %v97
    %v110 = vpack.c.b16 %v100, %v99
    %v111 = vpack.c.b16 %v102, %v101
    %v112 = vpack.c.b16 %v104, %v103
    %121 = vmatprep.subr.bf16.mxu0 0
    %122 = vmatpush1.bf16.msra.mxu0 %v105
    %123 = vmatprep.subr.bf16.mxu0 0
    %124 = vmatpush1.bf16.msra.mxu0 %v106
    %125 = vmatprep.subr.bf16.mxu0 0
    %126 = vmatpush1.bf16.msra.mxu0 %v107
    %127 = vmatprep.subr.bf16.mxu0 0
    %128 = vmatpush1.bf16.msra.mxu0 %v108
    %129 = vmatprep.subr.bf16.mxu0 0
    %130 = vmatpush1.bf16.msra.mxu0 %v109
    %131 = vmatprep.subr.bf16.mxu0 0
    %132 = vmatpush1.bf16.msra.mxu0 %v110
    %133 = vmatprep.subr.bf16.mxu0 0
    %134 = vmatpush1.bf16.msra.mxu0 %v111
    %135 = vmatprep.subr.bf16.mxu0 0
    %136 = vmatpush1.bf16.msra.mxu0 %v112
    %137 = vmatprep.subr.bf16.mxu0 0
    %138 = vmatpush1.bf16.msra.mxu0 0
    %139 = vmatprep.subr.bf16.mxu0 0
    %140 = vmatpush1.bf16.msra.mxu0 0
    %141 = vmatprep.subr.bf16.mxu0 0
    %142 = vmatpush1.bf16.msra.mxu0 0
    %143 = vmatprep.subr.bf16.mxu0 0
    %144 = vmatpush1.bf16.msra.mxu0 0
    %145 = vmatprep.subr.bf16.mxu0 0
    %146 = vmatpush1.bf16.msra.mxu0 0
    %147 = vmatprep.subr.bf16.mxu0 0
    %148 = vmatpush1.bf16.msra.mxu0 0
    %149 = vmatprep.subr.bf16.mxu0 0
    %150 = vmatpush1.bf16.msra.mxu0 0
    %151 = vmatprep.subr.bf16.mxu0 0
    %152 = vmatpush1.bf16.msra.mxu0 0
    %153 = vmatprep.mubr.bf16.mxu0 0
    %154 = vmatmul.mubr.bf16.gmra.mrb[0].mxu0 %v69
    %v155 = vpop.f32.mrb[0].mxu0
    %v156 = vadd.f32 0.0, %v155
    %v157 = vpop.f32.mrb[0].mxu0
    %v158 = vpop.f32.mrb[0].mxu0
    %v159 = vadd.f32 0.0, %v158
    %v160 = vpop.f32.mrb[0].mxu0
    %161 = vmatprep.mubr.bf16.mxu0 0
    %162 = vmatmul.mubr.bf16.gmra.mrb[0].mxu0 %v70
    %v163 = vpop.f32.mrb[0].mxu0
    %v164 = vadd.f32 0.0, %v163
    %v165 = vpop.f32.mrb[0].mxu0
    %v166 = vpop.f32.mrb[0].mxu0
    %v167 = vadd.f32 0.0, %v166
    %v168 = vpop.f32.mrb[0].mxu0
    %169 = vdwg.mxu0
    %v170 = vpack.c.bf16 %v159, %v156
    %v171 = vpack.c.bf16 %v167, %v164
    %v174 = vunpack.c.l.b16 %v170
    %v175 = vunpack.c.h.b16 %v170
    %v176 = vunpack.c.l.b16 %v171
    %v177 = vunpack.c.h.b16 %v171
    %v178 = vpack.c.b16 %v174, %v174
    %v179 = vpack.c.b16 %v175, %v175
    %v180 = vpack.c.b16 %v176, %v176
    %v181 = vpack.c.b16 %v177, %v177
    %vm186 = vcmask 257024
    %187 = vst.msk [vmem:[#allocation7] sm:$0xf] %vm186, %v178
    %188 = vst.msk [vmem:[#allocation7 + $0x4] sm:$0xf] %vm186, %v179
    %189 = vst.msk [vmem:[#allocation7 + $0x8] sm:$0xf] %vm186, %v180
    %190 = vst.msk [vmem:[#allocation7 + $0xc] sm:$0xf] %vm186, %v181
    // Predicated region
    $region18: #{tpu_custom_call.1} parent=1 // pred_check
      _
    $region19: #{tpu_custom_call.1} parent=1 // pred_check_branch
      %192 = sbr.rel (0) target = $region21
    $region20: #{tpu_custom_call.1} parent=1 // pred_region
      %s194 = ssub.s32 256, 256
      %195 = vsyncadd [#allocation4], %s194
      %s196 = sshll.u32 [#allocation7], 4
      %s197 = int_to_ptr.vmem [resolvable:$true] %s196
      %202 = dma.vmem_to_hbm [thread:$0]  %s197, 256, %s2, [#allocation4], 64, 64, 4
    $region21: #{tpu_custom_call.1} parent=1 // pred_fallthru
      _
    // Predicated region
    $region22: #{tpu_custom_call.1} parent=1 // pred_check
      _
    $region23: #{tpu_custom_call.1} parent=1 // pred_check_branch
      %204 = sbr.rel (0) target = $region25
    $region24: #{tpu_custom_call.1} parent=1 // pred_region
      %205 = dma.done [#allocation4], 256
    $region25: #{tpu_custom_call.1} parent=1 // pred_fallthru
      _
    %206 = vsyncpa [#allocation3], 1
    %207 = vsyncpa [#allocation6], 1
    %208 = vsyncpa [#allocation4], 1

</llo_original>
